<compile_context>
chip_gen: v6e
topology: v6e:2x2x1
jax: 0.10.0
libtpu: 0.0.40
codegen_flags: <defaults>
</compile_context>

<pallas_src>
import math
import functools

import jax
import jax.numpy as jnp
from jax.experimental import pallas as pl
from jax.experimental.pallas import tpu as pltpu


_VMEM_LIMIT = 48 * 1024 * 1024   # explicit scoped-VMEM budget (v5e default is 16 MiB)


# ----------------------------- helpers -----------------------------

def _pick_tile(dim, target, mult):
    """Largest multiple of `mult` that divides `dim` and is <= target (or full dim)."""
    if dim <= target:
        return dim
    t = (target // mult) * mult
    while t >= mult:
        if dim % t == 0:
            return t
        t -= mult
    return dim


def _gelu(y):
    # TODO(synk): HF BERT default is exact erf GELU; tanh approximation used because
    # erf has no guaranteed Mosaic lowering (f32 VPU/EUP math only).
    c = 0.7978845608028654  # sqrt(2/pi)
    return 0.5 * y * (1.0 + jnp.tanh(c * (y + 0.044715 * y * y * y)))


# ----------------------------- dense (full-K GEMM + bias/GELU epilogue) ----------

def _dense_kernel(x_ref, w_ref, b_ref, o_ref, *, activation):
    y = jnp.dot(x_ref[...], w_ref[...], preferred_element_type=jnp.float32)
    y = y + b_ref[...]
    if activation == "gelu":
        y = _gelu(y)
    o_ref[...] = y.astype(o_ref.dtype)


def dense(x, w, b, *, activation=None, out_dtype=jnp.bfloat16, tm=1024, tn=1024):
    """y = x @ w + b (+GELU). x:[M,K] bf16, w:[K,N] bf16, b:[N] f32. Full-K tiles."""
    m, k = x.shape
    n = w.shape[1]
    tm = _pick_tile(m, tm, 16)    # bf16 sublane packing: 16 rows / vreg
    tn = _pick_tile(n, tn, 256)   # 256-deep/ wide MXU alignment on v6e/v7x
    grid = (m // tm, n // tn)
    return pl.pallas_call(
        functools.partial(_dense_kernel, activation=activation),
        out_shape=jax.ShapeDtypeStruct((m, n), out_dtype),
        grid=grid,
        in_specs=[
            pl.BlockSpec((tm, k), lambda i, j: (i, 0)),   # X resident across j
            pl.BlockSpec((k, tn), lambda i, j: (0, j)),
            pl.BlockSpec((1, tn), lambda i, j: (0, j)),
        ],
        out_specs=pl.BlockSpec((tm, tn), lambda i, j: (i, j)),
        compiler_params=pltpu.CompilerParams(
            dimension_semantics=("parallel", "parallel"),
            vmem_limit_bytes=_VMEM_LIMIT),
    )(x, w, b.reshape(1, n).astype(jnp.float32))


# --------------- dense + residual + LayerNorm fused epilogue (full-K, full-N) ----

def _dense_add_ln_kernel(x_ref, w_ref, b_ref, r_ref, g_ref, bb_ref, o_ref):
    y = jnp.dot(x_ref[...], w_ref[...], preferred_element_type=jnp.float32)
    y = y + b_ref[...] + r_ref[...].astype(jnp.float32)        # bias + residual (f32)
    mean = jnp.mean(y, axis=-1, keepdims=True)
    d = y - mean
    var = jnp.mean(d * d, axis=-1, keepdims=True)
    inv = jax.lax.rsqrt(var + 1e-12)                            # BERT LayerNorm eps
    o_ref[...] = (d * inv * g_ref[...] + bb_ref[...]).astype(o_ref.dtype)


def dense_add_layernorm(x, w, b, res, gamma, beta, *,
                        out_dtype=jnp.bfloat16, tm=512):
    """LayerNorm(x @ w + b + res): GEMM with residual-add + LN fused into the epilogue.
       N must be the full hidden width (LN needs whole rows)."""
    m, k = x.shape
    n = w.shape[1]
    tm = _pick_tile(m, tm, 16)
    return pl.pallas_call(
        _dense_add_ln_kernel,
        out_shape=jax.ShapeDtypeStruct((m, n), out_dtype),
        grid=(m // tm,),
        in_specs=[
            pl.BlockSpec((tm, k), lambda i: (i, 0)),
            pl.BlockSpec((k, n), lambda i: (0, 0)),     # W fetched once (constant block)
            pl.BlockSpec((1, n), lambda i: (0, 0)),
            pl.BlockSpec((tm, n), lambda i: (i, 0)),    # residual
            pl.BlockSpec((1, n), lambda i: (0, 0)),
            pl.BlockSpec((1, n), lambda i: (0, 0)),
        ],
        out_specs=pl.BlockSpec((tm, n), lambda i: (i, 0)),
        compiler_params=pltpu.CompilerParams(
            dimension_semantics=("parallel",),
            vmem_limit_bytes=_VMEM_LIMIT),
    )(x, w, b.reshape(1, n).astype(jnp.float32), res,
      gamma.reshape(1, n).astype(jnp.float32),
      beta.reshape(1, n).astype(jnp.float32))


# ----------------------------- LayerNorm (embeddings only) ------------------------

def _ln_kernel(x_ref, g_ref, b_ref, o_ref):
    x = x_ref[...].astype(jnp.float32)
    mean = jnp.mean(x, axis=-1, keepdims=True)
    d = x - mean
    var = jnp.mean(d * d, axis=-1, keepdims=True)
    inv = jax.lax.rsqrt(var + 1e-12)
    o_ref[...] = (d * inv * g_ref[...] + b_ref[...]).astype(o_ref.dtype)


def layernorm(x, gamma, beta, *, out_dtype=jnp.bfloat16, tm=1024):
    m, h = x.shape
    tm = _pick_tile(m, tm, 16)
    return pl.pallas_call(
        _ln_kernel,
        out_shape=jax.ShapeDtypeStruct((m, h), out_dtype),
        grid=(m // tm,),
        in_specs=[
            pl.BlockSpec((tm, h), lambda i: (i, 0)),
            pl.BlockSpec((1, h), lambda i: (0, 0)),
            pl.BlockSpec((1, h), lambda i: (0, 0)),
        ],
        out_specs=pl.BlockSpec((tm, h), lambda i: (i, 0)),
        compiler_params=pltpu.CompilerParams(
            dimension_semantics=("parallel",),
            vmem_limit_bytes=_VMEM_LIMIT),
    )(x, gamma.reshape(1, h).astype(jnp.float32),
      beta.reshape(1, h).astype(jnp.float32))


# ----------------------------- attention (query-tiled, per-head scratch) ----------

def _attn_kernel(qkv_ref, m_ref, o_ref, ctx_ref, *, nh, dh, hidden, tq):
    # qkv_ref: (S, 3H) bf16 for one batch element (resident across query tiles);
    # m_ref: (1, 1, S) additive f32 mask; ctx_ref: (tq, H) f32 VMEM scratch.
    row0 = pl.multiple_of(pl.program_id(1) * tq, tq)
    mask = m_ref[0]                                    # (1, S) f32, hoisted once
    for h in range(nh):
        # Per-head result goes straight into its (tq, dh) slice of the f32 scratch,
        # so the (tq, S) score tile dies before the next head starts (no concat /
        # 64-lane relayout, bounded live ranges).
        q = qkv_ref[pl.ds(row0, tq), h * dh:(h + 1) * dh]                      # pre-scaled
        k = qkv_ref[:, hidden + h * dh: hidden + (h + 1) * dh]
        v = qkv_ref[:, 2 * hidden + h * dh: 2 * hidden + (h + 1) * dh]
        s = jax.lax.dot_general(q, k, (((1,), (1,)), ((), ())),
                                preferred_element_type=jnp.float32)            # (tq, S)
        s = s + mask
        s = s - jnp.max(s, axis=-1, keepdims=True)
        p = jnp.exp(s)
        p = p * pl.reciprocal(jnp.sum(p, axis=-1, keepdims=True), approx=True)
        ctx_ref[:, h * dh:(h + 1) * dh] = jnp.dot(
            p.astype(qkv_ref.dtype), v, preferred_element_type=jnp.float32)
    # Single unmasked lane-dense (tq, H) store.
    o_ref[...] = ctx_ref[...].astype(o_ref.dtype)


def attention(qkv, ext_mask, B, S, H, nh, *, tq=256):
    """qkv: [B*S, 3H] bf16 (Q pre-scaled); ext_mask: [B,1,S] additive f32."""
    dh = H // nh
    tq = _pick_tile(S, tq, 16)
    nq = S // tq
    return pl.pallas_call(
        functools.partial(_attn_kernel, nh=nh, dh=dh, hidden=H, tq=tq),
        out_shape=jax.ShapeDtypeStruct((B * S, H), jnp.bfloat16),
        grid=(B, nq),
        in_specs=[
            pl.BlockSpec((S, 3 * H), lambda b, qi: (b, 0)),   # fetched once per batch elem
            pl.BlockSpec((1, 1, S), lambda b, qi: (b, 0, 0)),
        ],
        out_specs=pl.BlockSpec((tq, H), lambda b, qi: (b * nq + qi, 0)),
        scratch_shapes=[pltpu.VMEM((tq, H), jnp.float32)],
        compiler_params=pltpu.CompilerParams(
            dimension_semantics=("parallel", "parallel"),
            vmem_limit_bytes=_VMEM_LIMIT),
    )(qkv, ext_mask)


# ----------------------------- params -----------------------------

def init_bert_params(key, cfg):
    H, I, L = cfg["hidden"], cfg["inter"], cfg["num_labels"]
    keys = iter(jax.random.split(key, 256))
    std = 0.02
    nrm = lambda shape: std * jax.random.normal(next(keys), shape, jnp.float32)
    ones = lambda n: jnp.ones((n,), jnp.float32)
    zeros = lambda n: jnp.zeros((n,), jnp.float32)

    params = dict(
        word_emb=nrm((cfg["vocab"], H)),
        pos_emb=nrm((cfg["max_pos"], H)),
        type_emb=nrm((2, H)),
        emb_ln_g=ones(H), emb_ln_b=zeros(H),
        cls_w=nrm((H, L)), cls_b=zeros(L),
        layers=[],
    )
    for _ in range(cfg["layers"]):
        params["layers"].append(dict(
            wq=nrm((H, H)), bq=zeros(H),
            wk=nrm((H, H)), bk=zeros(H),
            wv=nrm((H, H)), bv=zeros(H),
            wo=nrm((H, H)), bo=zeros(H),
            ln1_g=ones(H), ln1_b=zeros(H),
            wi=nrm((H, I)), bi=zeros(I),
            wout=nrm((I, H)), bout=zeros(H),
            ln2_g=ones(H), ln2_b=zeros(H),
        ))
    return params


def prepare_params(params, cfg):
    """Fuse QKV, fold 1/sqrt(dh) into Q, cast matmul weights to bf16, pad classifier."""
    H, nh, L = cfg["hidden"], cfg["heads"], cfg["num_labels"]
    scale = 1.0 / math.sqrt(H // nh)
    bf16 = lambda a: a.astype(jnp.bfloat16)

    fast = dict(
        word_emb=params["word_emb"], pos_emb=params["pos_emb"],
        type_emb=params["type_emb"],
        emb_ln_g=params["emb_ln_g"], emb_ln_b=params["emb_ln_b"],
        layers=[],
    )
    # Classifier padded to 128 output lanes (lane-dense stores); sliced in glue.
    Lpad = max(128, ((L + 127) // 128) * 128)
    fast["cls_w"] = bf16(jnp.pad(params["cls_w"], ((0, 0), (0, Lpad - L))))
    fast["cls_b"] = jnp.pad(params["cls_b"], (0, Lpad - L))
    fast["num_labels_pad"] = Lpad

    for lp in params["layers"]:
        fast["layers"].append(dict(
            w_qkv=bf16(jnp.concatenate(
                [lp["wq"] * scale, lp["wk"], lp["wv"]], axis=1)),   # [H, 3H]
            b_qkv=jnp.concatenate([lp["bq"] * scale, lp["bk"], lp["bv"]]),
            wo=bf16(lp["wo"]), bo=lp["bo"],
            ln1_g=lp["ln1_g"], ln1_b=lp["ln1_b"],
            wi=bf16(lp["wi"]), bi=lp["bi"],
            wout=bf16(lp["wout"]), bout=lp["bout"],
            ln2_g=lp["ln2_g"], ln2_b=lp["ln2_b"],
        ))
    return fast


# ----------------------------- model (glue) -----------------------------

def encoder_layer(x, lp, ext_mask, B, S, H, nh):
    qkv = dense(x, lp["w_qkv"], lp["b_qkv"])                 # [B*S, 3H] bf16 (fused QKV)
    ctx = attention(qkv, ext_mask, B, S, H, nh)              # [B*S, H]  bf16
    # attention-output projection + residual + LayerNorm fused (dropout = identity)
    x = dense_add_layernorm(ctx, lp["wo"], lp["bo"], x, lp["ln1_g"], lp["ln1_b"])
    h = dense(x, lp["wi"], lp["bi"], activation="gelu")      # [B*S, I]
    # FFN-output projection + residual + LayerNorm fused
    x = dense_add_layernorm(h, lp["wout"], lp["bout"], x, lp["ln2_g"], lp["ln2_b"])
    return x


def ner_forward(params, cfg, input_ids, attention_mask, labels=None):
    """Mirrors BertForTokenClassification(..., return_dict=False):
       returns (logits,) or (loss, logits)."""
    B, S = input_ids.shape
    H, nh, L = cfg["hidden"], cfg["heads"], cfg["num_labels"]

    # Embeddings (gathers are plain-JAX glue), token_type_ids = 0.
    word = params["word_emb"][input_ids]                          # (B, S, H)
    pos = params["pos_emb"][jnp.arange(S)][None, :, :]            # (1, S, H)
    tok = params["type_emb"][0][None, None, :]
    # bf16 input to the LN kernel (halves the HBM read; stats are f32 in-kernel).
    x = (word + pos + tok).reshape(B * S, H).astype(jnp.bfloat16)
    x = layernorm(x, params["emb_ln_g"], params["emb_ln_b"])      # -> bf16, dropout=id

    maskf = attention_mask.astype(jnp.float32)
    ext_mask = ((1.0 - maskf) * -10000.0).reshape(B, 1, S)

    for lp in params["layers"]:
        x = encoder_layer(x, lp, ext_mask, B, S, H, nh)

    logits_pad = dense(x, params["cls_w"], params["cls_b"],
                       out_dtype=jnp.float32)                     # [B*S, Lpad] f32
    logits = logits_pad[:, :L].reshape(B, S, L)

    if labels is None:
        return (logits,)

    # Masked token-level cross-entropy (HF: inactive tokens ignored). Glue-sized.
    logp = jax.nn.log_softmax(logits, axis=-1)
    ll = jnp.take_along_axis(logp, labels[..., None], axis=-1)[..., 0]
    loss = -(ll * maskf).sum() / jnp.maximum(maskf.sum(), 1.0)
    return (loss, logits)


# ----------------------------- main -----------------------------

if __name__ == "__main__":
    cfg = dict(vocab=128, hidden=32, heads=4, inter=64, layers=2,
               max_pos=64, num_labels=5)

    key = jax.random.PRNGKey(0)
    pk, ik, lk = jax.random.split(key, 3)

    params = prepare_params(init_bert_params(pk, cfg), cfg)

    B, S = 2, 8
    input_ids = jax.random.randint(ik, (B, S), 0, cfg["vocab"], dtype=jnp.int32)
    attention_mask = jnp.array([[1, 1, 1, 1, 1, 1, 1, 0],
                                [1, 1, 1, 1, 1, 0, 0, 0]], dtype=jnp.int32)
    labels = jax.random.randint(lk, (B, S), 0, cfg["num_labels"], dtype=jnp.int32)

    loss, logits = ner_forward(params, cfg, input_ids, attention_mask, labels)
    jax.block_until_ready((loss, logits))

    assert logits.shape == (B, S, cfg["num_labels"])
    assert logits.dtype == jnp.float32
    assert jnp.isfinite(loss)
    assert bool(jnp.all(jnp.isfinite(logits)))

    # Also exercise the labels=None path (returns (logits,)).
    (logits_only,) = ner_forward(params, cfg, input_ids, attention_mask, None)
    jax.block_until_ready(logits_only)
    assert logits_only.shape == (B, S, cfg["num_labels"])

    print("KERNEL_OK")
</pallas_src>

<mosaic_0001>
module attributes {stable_mosaic.version = 11 : i64} {
  func.func @_ln_kernel(%arg0: i32, %arg1: memref<16x32xbf16, #tpu.memory_space<vmem>>, %arg2: memref<1x32xf32, #tpu.memory_space<vmem>>, %arg3: memref<1x32xf32, #tpu.memory_space<vmem>>, %arg4: memref<16x32xbf16, #tpu.memory_space<vmem>>) attributes {dimension_semantics = [#tpu.dimension_semantics<parallel>], iteration_bounds = array<i64: 1>, scalar_prefetch = 0 : i64, scratch_operands = 0 : i64, tpu.core_type = #tpu.core_type<tc>, window_params = [{transform_indices = @transform_0, window_bounds = array<i64: 16, 32>}, {pipeline_mode = #tpu.pipeline_mode<synchronous>, transform_indices = @transform_1, window_bounds = array<i64: 1, 32>}, {pipeline_mode = #tpu.pipeline_mode<synchronous>, transform_indices = @transform_2, window_bounds = array<i64: 1, 32>}, {transform_indices = @transform_3, window_bounds = array<i64: 16, 32>}]} {
    %c0 = arith.constant 0 : index
    %c0_0 = arith.constant 0 : index
    %0 = vector.load %arg1[%c0, %c0_0] : memref<16x32xbf16, #tpu.memory_space<vmem>>, vector<16x32xbf16>
    %1 = arith.extf %0 : vector<16x32xbf16> to vector<16x32xf32>
    %cst = arith.constant dense<0.000000e+00> : vector<16xf32>
    %2 = vector.multi_reduction <add>, %1, %cst [1] : vector<16x32xf32> to vector<16xf32>
    %3 = vector.shape_cast %2 : vector<16xf32> to vector<16x1xf32>
    %cst_1 = arith.constant 3.200000e+01 : f32
    %4 = vector.broadcast %cst_1 : f32 to vector<16x1xf32>
    %5 = arith.divf %3, %4 : vector<16x1xf32>
    %6 = vector.broadcast %5 : vector<16x1xf32> to vector<16x32xf32>
    %7 = arith.subf %1, %6 : vector<16x32xf32>
    %8 = arith.mulf %7, %7 : vector<16x32xf32>
    %cst_2 = arith.constant dense<0.000000e+00> : vector<16xf32>
    %9 = vector.multi_reduction <add>, %8, %cst_2 [1] : vector<16x32xf32> to vector<16xf32>
    %10 = vector.shape_cast %9 : vector<16xf32> to vector<16x1xf32>
    %cst_3 = arith.constant 3.200000e+01 : f32
    %11 = vector.broadcast %cst_3 : f32 to vector<16x1xf32>
    %12 = arith.divf %10, %11 : vector<16x1xf32>
    %cst_4 = arith.constant 9.99999996E-13 : f32
    %13 = vector.broadcast %cst_4 : f32 to vector<16x1xf32>
    %14 = arith.addf %12, %13 : vector<16x1xf32>
    %15 = math.rsqrt %14 : vector<16x1xf32>
    %16 = vector.broadcast %15 : vector<16x1xf32> to vector<16x32xf32>
    %17 = arith.mulf %7, %16 : vector<16x32xf32>
    %c0_5 = arith.constant 0 : index
    %c0_6 = arith.constant 0 : index
    %18 = vector.load %arg2[%c0_5, %c0_6] : memref<1x32xf32, #tpu.memory_space<vmem>>, vector<1x32xf32>
    %19 = vector.broadcast %18 : vector<1x32xf32> to vector<16x32xf32>
    %20 = arith.mulf %17, %19 : vector<16x32xf32>
    %c0_7 = arith.constant 0 : index
    %c0_8 = arith.constant 0 : index
    %21 = vector.load %arg3[%c0_7, %c0_8] : memref<1x32xf32, #tpu.memory_space<vmem>>, vector<1x32xf32>
    %22 = vector.broadcast %21 : vector<1x32xf32> to vector<16x32xf32>
    %23 = arith.addf %20, %22 : vector<16x32xf32>
    %24 = arith.truncf %23 : vector<16x32xf32> to vector<16x32xbf16>
    %c0_9 = arith.constant 0 : index
    %c0_10 = arith.constant 0 : index
    %25 = vector.load %arg4[%c0_9, %c0_10] : memref<16x32xbf16, #tpu.memory_space<vmem>>, vector<16x32xbf16>
    tpu.vector_store %arg4[%c0_9, %c0_10], %24 {strides = array<i32>} : memref<16x32xbf16, #tpu.memory_space<vmem>>, vector<16x32xbf16>,
    return
  }
  func.func @transform_0(%arg0: i32) -> (i32, i32) {
    %c0_i32 = arith.constant 0 : i32
    %c0_i32_0 = arith.constant 0 : i32
    return %arg0, %c0_i32 : i32, i32
  }
  func.func @transform_1(%arg0: i32) -> (i32, i32) {
    %c0_i32 = arith.constant 0 : i32
    %c0_i32_0 = arith.constant 0 : i32
    %c0_i32_1 = arith.constant 0 : i32
    return %c0_i32, %c0_i32_0 : i32, i32
  }
  func.func @transform_2(%arg0: i32) -> (i32, i32) {
    %c0_i32 = arith.constant 0 : i32
    %c0_i32_0 = arith.constant 0 : i32
    %c0_i32_1 = arith.constant 0 : i32
    return %c0_i32, %c0_i32_0 : i32, i32
  }
  func.func @transform_3(%arg0: i32) -> (i32, i32) {
    %c0_i32 = arith.constant 0 : i32
    %c0_i32_0 = arith.constant 0 : i32
    return %arg0, %c0_i32 : i32, i32
  }
}

</mosaic_0001>

<llo_original>
// kernel: tpu_custom_call.1
$region0: #{tpu_custom_call.1}
  #allocation0 [shape = 'u32[]', space=smem, size = 0x4, offset = 0x4, fixed_abs, tag = 'smem constant byte address 0x4 - core index']
  #allocation1 [shape = 'u32[144,128]{1,0:T(1,128)}', space=vmem, size = 0x12000, scoped, tag = 'internal scratch']
  %s0 = inlined_call_operand.hbm [shape: bf16[16,32], index: 0, kind: input, shape index: {}]
  %s1 = inlined_call_operand.vmem [shape: f32[1,32], index: 1, kind: input, shape index: {}]
  %s2 = inlined_call_operand.vmem [shape: f32[1,32], index: 2, kind: input, shape index: {}]
  %s3 = inlined_call_operand.hbm [shape: bf16[16,32], index: 3, kind: output, shape index: {}]
  %s4 = sld [smem:[#allocation0]]
  $region26: #{tpu_custom_call.1} parent=0
    _
  %s6 = ssub.s32 1, %s4
  %s7 = scalar_select 0, %s6, %s4
  $region1: #{tpu_custom_call.1} parent=0
    #allocation2 [shape = 'u8[4096]{0}', space=vmem, size = 0x1000, scoped, tag = 'input window, operand 0, single buffered']
    #allocation3 [shape = 's32[1]{0}', space=sflag, size = 0x4, scoped, tag = 'scoped memory for tpu_custom_call.1']
    #allocation4 [shape = 's32[1]{0}', space=sflag, size = 0x4, scoped, tag = 'scoped memory for tpu_custom_call.1']
    #allocation5 [shape = 'u8[4096]{0}', space=vmem, size = 0x1000, scoped, tag = 'output window, operand 0, single buffered']
    %8 = vsyncpa [#allocation3], 0
    %9 = vsyncpa [#allocation4], 0
    // Predicated region
    $region2: #{tpu_custom_call.1} parent=1 // pred_check
      _
    $region3: #{tpu_custom_call.1} parent=1 // pred_check_branch
      %11 = sbr.rel (0) target = $region5
    $region4: #{tpu_custom_call.1} parent=1 // pred_region
      %s13 = ssub.s32 128, 128
      %14 = vsyncadd [#allocation3], %s13
      %s15 = sshll.u32 [#allocation2], 4
      %s16 = int_to_ptr.vmem [resolvable:$true] %s15
      %21 = dma.hbm_to_vmem [thread:$0]  %s0, 128, %s16, [#allocation3], 64, 64, 4
    $region5: #{tpu_custom_call.1} parent=1 // pred_fallthru
      _
    // Predicated region
    $region6: #{tpu_custom_call.1} parent=1 // pred_check
      _
    $region7: #{tpu_custom_call.1} parent=1 // pred_check_branch
      %23 = sbr.rel (0) target = $region9
    $region8: #{tpu_custom_call.1} parent=1 // pred_region
      _
    $region9: #{tpu_custom_call.1} parent=1 // pred_fallthru
      _
    // Predicated region
    $region10: #{tpu_custom_call.1} parent=1 // pred_check
      _
    $region11: #{tpu_custom_call.1} parent=1 // pred_check_branch
      %25 = sbr.rel (0) target = $region13
    $region12: #{tpu_custom_call.1} parent=1 // pred_region
      _
    $region13: #{tpu_custom_call.1} parent=1 // pred_fallthru
      _
    // Predicated region
    $region14: #{tpu_custom_call.1} parent=1 // pred_check
      _
    $region15: #{tpu_custom_call.1} parent=1 // pred_check_branch
      %27 = sbr.rel (0) target = $region17
    $region16: #{tpu_custom_call.1} parent=1 // pred_region
      %28 = dma.done [#allocation3], 128
    $region17: #{tpu_custom_call.1} parent=1 // pred_fallthru
      _
    %v29 = vld [vmem:[#allocation2] sm:$0xf]
    %v30 = vld [vmem:[#allocation2 + $0x4] sm:$0xf]
    %v31 = vunpack.c.l.bf16 %v29
    %v32 = vunpack.c.l.bf16 %v30
    %vm33 = vcmask 261120
    %v34 = vsel %vm33, %v31, 0.0
    %35 = vadd.xlane.f32.xlu0 %v34
    %v36 = vpop.xlane.xlu0 %35
    %v37 = vsel %vm33, %v32, 0.0
    %38 = vadd.xlane.f32.xlu0 %v37
    %v39 = vpop.xlane.xlu0 %38
    %v40 = vrcp.pop 32.0
    %v41 = vmul.f32 %v36, %v40
    %v42 = vmul.f32 %v39, %v40
    %v43 = vsub.f32 %v31, %v41
    %v44 = vsub.f32 %v32, %v42
    %v45 = vmul.f32 %v43, %v43
    %v46 = vmul.f32 %v44, %v44
    %v47 = vsel %vm33, %v45, 0.0
    %48 = vadd.xlane.f32.xlu0 %v47
    %v49 = vpop.xlane.xlu0 %48
    %v50 = vsel %vm33, %v46, 0.0
    %51 = vadd.xlane.f32.xlu0 %v50
    %v52 = vpop.xlane.xlu0 %51
    %v53 = vmul.f32 %v49, %v40
    %v54 = vmul.f32 %v52, %v40
    %v55 = vadd.f32 %v53, 1e-12
    %v56 = vadd.f32 %v54, 1e-12
    %v57 = vrsqrt.pop %v55
    %v58 = vrsqrt.pop %v56
    %v59 = vmul.f32 %v43, %v57
    %v60 = vmul.f32 %v44, %v58
    %v61 = vld [vmem:[%s1] sm:$0x1]
    %v63 = vlaneseq
    %v64 = vshrl.u32 %v63, 7
    %v65 = vsub.s32 0, %v64
    %v66 = vrot.slane %v61, %v65
    %v68 = vmul.f32 %v59, %v66
    %v69 = vmul.f32 %v60, %v66
    %v70 = vld [vmem:[%s2] sm:$0x1]
    %v72 = vlaneseq
    %v73 = vshrl.u32 %v72, 7
    %v74 = vsub.s32 0, %v73
    %v75 = vrot.slane %v70, %v74
    %v77 = vadd.f32 %v68, %v75
    %v78 = vadd.f32 %v69, %v75
    %v79 = vpack.c.bf16 %v78, %v77
    %v81 = vunpack.c.l.b16 %v79
    %v82 = vunpack.c.h.b16 %v79
    %v83 = vpack.c.b16 %v81, %v81
    %v84 = vpack.c.b16 %v82, %v82
    %vm87 = vcmask 257024
    %88 = vst.msk [vmem:[#allocation5] sm:$0xf] %vm87, %v83
    %89 = vst.msk [vmem:[#allocation5 + $0x4] sm:$0xf] %vm87, %v84
    // Predicated region
    $region18: #{tpu_custom_call.1} parent=1 // pred_check
      _
    $region19: #{tpu_custom_call.1} parent=1 // pred_check_branch
      %91 = sbr.rel (0) target = $region21
    $region20: #{tpu_custom_call.1} parent=1 // pred_region
      %s93 = ssub.s32 128, 128
      %94 = vsyncadd [#allocation4], %s93
      %s95 = sshll.u32 [#allocation5], 4
      %s96 = int_to_ptr.vmem [resolvable:$true] %s95
      %101 = dma.vmem_to_hbm [thread:$0]  %s96, 128, %s3, [#allocation4], 64, 64, 4
    $region21: #{tpu_custom_call.1} parent=1 // pred_fallthru
      _
    // Predicated region
    $region22: #{tpu_custom_call.1} parent=1 // pred_check
      _
    $region23: #{tpu_custom_call.1} parent=1 // pred_check_branch
      %103 = sbr.rel (0) target = $region25
    $region24: #{tpu_custom_call.1} parent=1 // pred_region
      %104 = dma.done [#allocation4], 128
    $region25: #{tpu_custom_call.1} parent=1 // pred_fallthru
      _
    %105 = vsyncpa [#allocation3], 1
    %106 = vsyncpa [#allocation4], 1

</llo_original>
